<compile_context>
chip_gen: v7x
topology: tpu7x:2x2x1
jax: 0.10.0
libtpu: 0.0.40
codegen_flags: <defaults>
</compile_context>

<pallas_src>
import jax
import jax.numpy as jnp
from jax.experimental import pallas as pl
from jax.experimental.pallas import tpu as pltpu


_TARGET_BLOCK_BYTES = 2 * 1024 * 1024     # per-operand block (~2 MiB)
_VMEM_LIMIT_BYTES = 32 * 1024 * 1024      # explicit scoped VMEM; safe on v5e/v6e/v7x


# ----------------------------------------------------------------------------
# Parameter ("buffer") construction — mirrors PositionalEncoding.__init__
# ----------------------------------------------------------------------------
def make_pe_table(d_model: int, max_len: int = 5000) -> jnp.ndarray:
    """Builds the (max_len, d_model) sinusoidal positional-encoding table."""
    if d_model % 2 != 0:
        # Same latent restriction as the PyTorch original (odd d_model mismatches).
        raise ValueError("sinusoidal PE requires an even d_model")
    position = jnp.arange(0, max_len, dtype=jnp.float32)[:, None]           # (max_len, 1)
    div_term = jnp.exp(
        jnp.arange(0, d_model, 2, dtype=jnp.float32)
        * (-jnp.log(jnp.float32(10000.0)) / d_model)
    )                                                                        # (d_model//2,)
    angles = position * div_term                                             # (max_len, d_model//2)
    pe = jnp.zeros((max_len, d_model), dtype=jnp.float32)
    pe = pe.at[:, 0::2].set(jnp.sin(angles))
    pe = pe.at[:, 1::2].set(jnp.cos(angles))
    return pe


# ----------------------------------------------------------------------------
# Pallas kernel: elementwise add of a PE tile (broadcast over batch)
# ----------------------------------------------------------------------------
def _add_pe_kernel(x_ref, pe_ref, o_ref):
    # x_ref / o_ref: (1, TR, TC)   pe_ref: (TR, TC)  -> broadcasts over leading 1.
    o_ref[...] = x_ref[...] + pe_ref[...]


def _largest_divisor_multiple(n: int, quantum: int, cap: int) -> int:
    """Largest divisor of n that is a multiple of `quantum` and <= cap.

    Assumes `quantum` divides n.  Result is always >= quantum.
    """
    best = quantum
    d = quantum
    hi = min(n, max(cap, quantum))
    while d <= hi:
        if n % d == 0:
            best = d
        d += quantum
    return best


def positional_encoding_forward(x: jnp.ndarray, pe: jnp.ndarray) -> jnp.ndarray:
    """x: (B, S, D).  pe: (max_len, D).  Returns x + pe[None, :S, :]."""
    B, S, D = x.shape
    max_len, d_model = pe.shape
    if d_model != D:
        raise ValueError(f"d_model mismatch: x has D={D}, pe table has {d_model}")
    if S > max_len:
        raise ValueError(f"sequence length {S} exceeds pe max_len {max_len}")

    itemsize = x.dtype.itemsize
    N = S * D

    # --- choose the (R, C) view of the (S, D) plane: make C lane-dense -------
    if D % 128 == 0 or N % 128 != 0:
        R, C = S, D                         # natural layout (lane-dense iff D%128==0)
    else:
        C = _largest_divisor_multiple(N, 128, 2048)
        R = N // C                          # refactored, lane-dense layout

    # --- tile sizes (block ~<= _TARGET_BLOCK_BYTES, (8,128)-legal) -----------
    if C % 128 == 0:
        tc_cap = max(128, _TARGET_BLOCK_BYTES // (8 * itemsize))
        tc = _largest_divisor_multiple(C, 128, min(C, tc_cap))
    else:
        tc = C                              # full extent: exempt from the 128 rule
    tr_cap = max(8, _TARGET_BLOCK_BYTES // max(1, tc * itemsize))
    if R % 8 == 0:
        tr = _largest_divisor_multiple(R, 8, min(R, tr_cap))
    else:
        tr = R                              # full extent: exempt from the 8 rule

    # --- PE operand -----------------------------------------------------------
    # Natural layout + 8-aligned row tile: pass the whole table and let the
    # index_map pick rows (avoids an XLA slice/copy of pe[:S] in HBM).
    use_full_table = (R == S and C == D and tr % 8 == 0)
    if use_full_table:
        pe_op = pe.astype(x.dtype)                           # (max_len, D)
    else:
        pe_op = pe[:S, :].reshape(R, C).astype(x.dtype)      # small one-off copy

    x3 = x.reshape(B, R, C)                 # row-major reshape: no data movement
    grid = (R // tr, C // tc, B)            # batch innermost -> PE block stays resident

    out3 = pl.pallas_call(
        _add_pe_kernel,
        out_shape=jax.ShapeDtypeStruct((B, R, C), x.dtype),
        grid_spec=pltpu.PrefetchScalarGridSpec(
            num_scalar_prefetch=0,
            grid=grid,
            in_specs=[
                pl.BlockSpec((1, tr, tc), lambda r, c, b: (b, r, c)),   # x tile
                pl.BlockSpec((tr, tc), lambda r, c, b: (r, c)),         # PE tile (batch-invariant)
            ],
            out_specs=pl.BlockSpec((1, tr, tc), lambda r, c, b: (b, r, c)),
        ),
        compiler_params=pltpu.CompilerParams(
            dimension_semantics=("parallel", "parallel", "parallel"),
            vmem_limit_bytes=_VMEM_LIMIT_BYTES,
        ),
        # NOTE: input_output_aliases={0: 0} would make this an in-place add and
        # halve the HBM footprint; left off so the caller keeps `x` valid.
    )(x3, pe_op)

    return out3.reshape(B, S, D)


# ----------------------------------------------------------------------------
# Pure-JAX reference for verification
# ----------------------------------------------------------------------------
def positional_encoding_ref(x: jnp.ndarray, pe: jnp.ndarray) -> jnp.ndarray:
    return x + pe[None, : x.shape[1], :]


if __name__ == "__main__":
    # Small shapes consistent with the module's forward: (batch, seq, d_model)
    B, S, D = 2, 8, 32
    max_len = 64  # small synthetic buffer (>= S)

    key = jax.random.PRNGKey(0)
    x = jax.random.normal(key, (B, S, D), dtype=jnp.float32)
    pe = make_pe_table(D, max_len)

    out = jax.block_until_ready(positional_encoding_forward(x, pe))
    ref = positional_encoding_ref(x, pe)

    assert out.shape == (B, S, D)
    assert out.dtype == jnp.float32
    assert jnp.allclose(out, ref, atol=1e-6, rtol=1e-6), "mismatch vs reference"

    print("KERNEL_OK")
</pallas_src>

<mosaic_0001>
module attributes {stable_mosaic.version = 11 : i64} {
  func.func @_add_pe_kernel(%arg0: i32, %arg1: i32, %arg2: i32, %arg3: memref<1x1x256xf32, #tpu.memory_space<vmem>>, %arg4: memref<1x256xf32, #tpu.memory_space<vmem>>, %arg5: memref<1x1x256xf32, #tpu.memory_space<vmem>>) attributes {dimension_semantics = [#tpu.dimension_semantics<parallel>, #tpu.dimension_semantics<parallel>, #tpu.dimension_semantics<parallel>], iteration_bounds = array<i64: 1, 1, 2>, scalar_prefetch = 0 : i64, scratch_operands = 0 : i64, tpu.core_type = #tpu.core_type<tc>, window_params = [{transform_indices = @transform_0, window_bounds = array<i64: 1, 1, 256>}, {transform_indices = @transform_1, window_bounds = array<i64: 1, 256>}, {transform_indices = @transform_2, window_bounds = array<i64: 1, 1, 256>}]} {
    %c0 = arith.constant 0 : index
    %c0_0 = arith.constant 0 : index
    %c0_1 = arith.constant 0 : index
    %0 = vector.load %arg3[%c0, %c0_0, %c0_1] : memref<1x1x256xf32, #tpu.memory_space<vmem>>, vector<1x1x256xf32>
    %c0_2 = arith.constant 0 : index
    %c0_3 = arith.constant 0 : index
    %1 = vector.load %arg4[%c0_2, %c0_3] : memref<1x256xf32, #tpu.memory_space<vmem>>, vector<1x256xf32>
    %2 = vector.shape_cast %1 : vector<1x256xf32> to vector<1x1x256xf32>
    %3 = arith.addf %0, %2 : vector<1x1x256xf32>
    %c0_4 = arith.constant 0 : index
    %c0_5 = arith.constant 0 : index
    %c0_6 = arith.constant 0 : index
    %4 = vector.load %arg5[%c0_4, %c0_5, %c0_6] : memref<1x1x256xf32, #tpu.memory_space<vmem>>, vector<1x1x256xf32>
    tpu.vector_store %arg5[%c0_4, %c0_5, %c0_6], %3 {strides = array<i32>} : memref<1x1x256xf32, #tpu.memory_space<vmem>>, vector<1x1x256xf32>,
    return
  }
  func.func @transform_0(%arg0: i32, %arg1: i32, %arg2: i32) -> (i32, i32, i32) {
    %c0_i32 = arith.constant 0 : i32
    return %arg2, %arg0, %arg1 : i32, i32, i32
  }
  func.func @transform_1(%arg0: i32, %arg1: i32, %arg2: i32) -> (i32, i32) {
    %c0_i32 = arith.constant 0 : i32
    return %arg0, %arg1 : i32, i32
  }
  func.func @transform_2(%arg0: i32, %arg1: i32, %arg2: i32) -> (i32, i32, i32) {
    %c0_i32 = arith.constant 0 : i32
    return %arg2, %arg0, %arg1 : i32, i32, i32
  }
}

</mosaic_0001>

<llo_original>
// kernel: tpu_custom_call.1
$region0: #{tpu_custom_call.1}
  #allocation0 [shape = 'u32[]', space=smem, size = 0x4, offset = 0x4, fixed_abs, tag = 'smem constant byte address 0x4 - core index']
  #allocation1 [shape = 'u32[144,128]{1,0:T(1,128)}', space=vmem, size = 0x12000, scoped, tag = 'internal scratch']
  %s0 = inlined_call_operand.hbm [shape: f32[2,1,256], index: 0, kind: input, shape index: {}]
  %s1 = inlined_call_operand.vmem [shape: f32[1,256], index: 1, kind: input, shape index: {}]
  %s2 = inlined_call_operand.hbm [shape: f32[2,1,256], index: 2, kind: output, shape index: {}]
  %s3 = sld [smem:[#allocation0]]
  $region45: #{tpu_custom_call.1} parent=0
    _
  %s5 = ssub.s32 1, %s3
  %s6 = scalar_select 0, %s5, %s3
  $region1: #{tpu_custom_call.1} parent=0
    #allocation2 [shape = 'u8[2048]{0}', space=vmem, size = 0x800, scoped, tag = 'input window, operand 0']
    #allocation3 [shape = 's32[2]{0}', space=sflag, size = 0x8, scoped, tag = 'scoped memory for tpu_custom_call.1']
    #allocation4 [shape = 's32[2]{0}', space=sflag, size = 0x8, scoped, tag = 'scoped memory for tpu_custom_call.1']
    #allocation5 [shape = 'u8[2048]{0}', space=vmem, size = 0x800, scoped, tag = 'output window, operand 0']
    %7 = vsyncpa [#allocation3], 0
    %s8 = scalar_lea.sflag [#allocation3], 1
    %9 = vsyncpa %s8, 0
    %10 = vsyncpa [#allocation4], 0
    %s11 = scalar_lea.sflag [#allocation4], 1
    %12 = vsyncpa %s11, 0
    loop: start=0, step=1, limit=4
    $region2: #{tpu_custom_call.1} parent=1 // loop_pre_header
      _
    $region3: #{tpu_custom_call.1} parent=1 // loop_header
      %s14 = sphi 0, %s18
      %p15 = scmp.ge.s32.totalorder %s14, 4
      %s21 = sphi 0, %s40
      %s22 = sphi 0, %s36
      %s23 = sphi 0, %s32
      %s24 = sphi 0, %s21
      %s25 = sphi 0, %s22
      %s26 = sphi 0, %s23
      %s27 = sphi 0, %s24
      %s28 = sphi 0, %s25
      %s29 = sphi 0, %s26
      %s47 = sphi 0, %s49
      %s50 = sphi 0, %s47
      %s51 = sphi 0, %s50
      %s67 = sphi 0, %s51
      %s75 = sphi 0, %s77
      %s78 = sphi 0, %s75
      %s79 = sphi 0, %s78
      %s95 = sphi 0, %s79
      %s105 = sphi 0, %s107
      %s108 = sphi 0, %s105
      %s109 = sphi 0, %s108
      %s125 = sphi 0, %s109
    $region4: #{tpu_custom_call.1} parent=1 // loop_header_branch
      %17 = sbr.rel (%p15) target = $region8
    $region5: #{tpu_custom_call.1} parent=1 // loop_body
      %s19 = ssub.s32 %s14, 1
      %s20 = ssub.s32 %s14, 2
      %s30 = sadd.s32 1, %s23
      %p31 = scmp.ge.s32.totalorder %s30, 2
      %s32 = scalar_select %p31, 0, %s30
      %s33 = sadd.s32 1, %s22
      %s34 = scalar_select %p31, %s33, %s22
      %p35 = scmp.ge.s32.totalorder %s34, 1
      %s36 = scalar_select %p35, 0, %s34
      %s37 = sadd.s32 1, %s21
      %s38 = scalar_select %p35, %s37, %s21
      %p39 = scmp.ge.s32.totalorder %s38, 1
      %s40 = scalar_select %p39, 0, %s38
      %s41 = ssub.s32 %s23, %s32
      %s42 = ssub.s32 %s21, %s40
      %s43 = sor.u32 %s41, %s42
      %s44 = ssub.s32 %s22, %s36
      %s45 = sor.u32 %s43, %s44
      %p46 = scmp.eq.s32.totalorder %s45, 0
      %s48 = sadd.s32 %s47, 1
      %s49 = scalar_select %p46, %s47, %s48
      %p52 = pneg %p46
      %p53 = scmp.eq.s32.totalorder %s14, 1
      %p54 = por %p52, %p53
      %p55 = scmp.ne.s32.totalorder %s47, %s50
      %p56 = scmp.eq.s32.totalorder %s14, 0
      %p57 = por %p55, %p56
      %p58 = scmp.ne.s32.totalorder %s47, %s50
      %p59 = scmp.eq.s32.totalorder %s19, 1
      %p60 = por %p58, %p59
      %p61 = scmp.ne.s32.totalorder %s50, %s51
      %p62 = scmp.eq.s32.totalorder %s19, 0
      %p63 = por %p61, %p62
      %p64 = scmp.ne.s32.totalorder %s50, %s51
      %p65 = scmp.eq.s32.totalorder %s20, 1
      %p66 = por %p64, %p65
      %p68 = scmp.ne.s32.totalorder %s51, %s67
      %p69 = scmp.eq.s32.totalorder %s20, 0
      %p70 = por %p68, %p69
      %s71 = ssub.s32 %s21, %s40
      %s72 = ssub.s32 %s22, %s36
      %s73 = sor.u32 %s71, %s72
      %p74 = scmp.eq.s32.totalorder %s73, 0
      %s76 = sadd.s32 %s75, 1
      %s77 = scalar_select %p74, %s75, %s76
      %p80 = pneg %p74
      %p81 = scmp.eq.s32.totalorder %s14, 1
      %p82 = por %p80, %p81
      %p83 = scmp.ne.s32.totalorder %s75, %s78
      %p84 = scmp.eq.s32.totalorder %s14, 0
      %p85 = por %p83, %p84
      %p86 = scmp.ne.s32.totalorder %s75, %s78
      %p87 = scmp.eq.s32.totalorder %s19, 1
      %p88 = por %p86, %p87
      %p89 = scmp.ne.s32.totalorder %s78, %s79
      %p90 = scmp.eq.s32.totalorder %s19, 0
      %p91 = por %p89, %p90
      %p92 = scmp.ne.s32.totalorder %s78, %s79
      %p93 = scmp.eq.s32.totalorder %s20, 1
      %p94 = por %p92, %p93
      %p96 = scmp.ne.s32.totalorder %s79, %s95
      %p97 = scmp.eq.s32.totalorder %s20, 0
      %p98 = por %p96, %p97
      %s99 = ssub.s32 %s23, %s32
      %s100 = ssub.s32 %s21, %s40
      %s101 = sor.u32 %s99, %s100
      %s102 = ssub.s32 %s22, %s36
      %s103 = sor.u32 %s101, %s102
      %p104 = scmp.eq.s32.totalorder %s103, 0
      %s106 = sadd.s32 %s105, 1
      %s107 = scalar_select %p104, %s105, %s106
      %p110 = pneg %p104
      %p111 = scmp.eq.s32.totalorder %s14, 1
      %p112 = por %p110, %p111
      %p113 = scmp.ne.s32.totalorder %s105, %s108
      %p114 = scmp.eq.s32.totalorder %s14, 0
      %p115 = por %p113, %p114
      %p116 = scmp.ne.s32.totalorder %s105, %s108
      %p117 = scmp.eq.s32.totalorder %s19, 1
      %p118 = por %p116, %p117
      %p119 = scmp.ne.s32.totalorder %s108, %s109
      %p120 = scmp.eq.s32.totalorder %s19, 0
      %p121 = por %p119, %p120
      %p122 = scmp.ne.s32.totalorder %s108, %s109
      %p123 = scmp.eq.s32.totalorder %s20, 1
      %p124 = por %p122, %p123
      %p126 = scmp.ne.s32.totalorder %s109, %s125
      %p127 = scmp.eq.s32.totalorder %s20, 0
      %p128 = por %p126, %p127
      %p129 = scmp.le.s32.totalorder 1, %s14
      %p130 = scmp.lt.s32.totalorder %s14, 3
      %p131 = pnand %p129, %p130
      %p132 = pneg %p131
      // Predicated region
      $region9: #{tpu_custom_call.1} parent=5 // pred_check
        _
      $region10: #{tpu_custom_call.1} parent=5 // pred_check_branch
        %134 = sbr.rel (%p131) target = $region12
      $region11: #{tpu_custom_call.1} parent=5 // pred_region
        %s135 = ssub.s32 %s14, 1
        // Predicated region
        $region13: #{tpu_custom_call.1} parent=11 // pred_check
          %p136 = pneg %p91
        $region14: #{tpu_custom_call.1} parent=11 // pred_check_branch
          %138 = sbr.rel (%p136) target = $region16
        $region15: #{tpu_custom_call.1} parent=11 // pred_region
          %s139 = smul.u32 2, %s25
          %p140 = scmp.lt.s32.totalorder %s24, 0
          %s141 = scalar_select %p140, %s24, 0
          %p142 = scmp.lt.s32.totalorder %s139, 1
          %s143 = scalar_select %p142, %s139, 1
          %s144 = smul.addr %s141, 2
          %s145 = sadd.s32 %s143, %s144
          %s146 = scalar_lea.vmem %s1, %s145
          %s147 = smul.u32 2, %s25
        $region16: #{tpu_custom_call.1} parent=11 // pred_fallthru
          _
      $region12: #{tpu_custom_call.1} parent=5 // pred_fallthru
        _
      %p148 = scmp.lt.s32.totalorder %s14, 2
      // Predicated region
      $region17: #{tpu_custom_call.1} parent=5 // pred_check
        %p149 = pneg %p148
      $region18: #{tpu_custom_call.1} parent=5 // pred_check_branch
        %151 = sbr.rel (%p149) target = $region20
      $region19: #{tpu_custom_call.1} parent=5 // pred_region
        // Predicated region
        $region21: #{tpu_custom_call.1} parent=19 // pred_check
          %p152 = pneg %p57
        $region22: #{tpu_custom_call.1} parent=19 // pred_check_branch
          %154 = sbr.rel (%p152) target = $region24
        $region23: #{tpu_custom_call.1} parent=19 // pred_region
          %s155 = sand.u32 %s47, 1
          %s156 = scalar_lea.sflag [#allocation3], %s155
          %s157 = sand.u32 %s47, 1
          %s158 = smul.addr %s157, 2
          %s159 = scalar_lea.vmem [#allocation2], %s158
          %s160 = smul.u32 2, %s22
          %s162 = ssub.s32 32, 32
          %163 = vsyncadd %s156, %s162
          %s164 = smul.addr %s21, 2
          %s165 = sadd.s32 %s160, %s164
          %s166 = smul.addr %s23, 2
          %s167 = sadd.s32 %s165, %s166
          %s168 = smul.addr %s167, 16
          %s169 = scalar_lea.hbm %s0, %s168
          %s171 = sshll.u32 %s159, 4
          %s172 = int_to_ptr.vmem [resolvable:$true] %s171
          %174 = dma.hbm_to_vmem [thread:$0]  %s169, 32, %s172, %s156
        $region24: #{tpu_custom_call.1} parent=19 // pred_fallthru
          _
      $region20: #{tpu_custom_call.1} parent=5 // pred_fallthru
        _
      %p175 = scmp.le.s32.totalorder 1, %s14
      %p176 = scmp.lt.s32.totalorder %s14, 3
      %p177 = pnand %p175, %p176
      %p178 = pneg %p177
      // Predicated region
      $region25: #{tpu_custom_call.1} parent=5 // pred_check
        _
      $region26: #{tpu_custom_call.1} parent=5 // pred_check_branch
        %180 = sbr.rel (%p177) target = $region28
      $region27: #{tpu_custom_call.1} parent=5 // pred_region
        %s181 = ssub.s32 %s14, 1
        %s182 = sand.u32 %s50, 1
        %s183 = scalar_lea.sflag [#allocation3], %s182
        %s184 = sand.u32 %s50, 1
        %s185 = smul.addr %s184, 2
        %s186 = scalar_lea.vmem [#allocation2], %s185
        // Predicated region
        $region29: #{tpu_custom_call.1} parent=27 // pred_check
          %p187 = pneg %p63
        $region30: #{tpu_custom_call.1} parent=27 // pred_check_branch
          %189 = sbr.rel (%p187) target = $region32
        $region31: #{tpu_custom_call.1} parent=27 // pred_region
          %190 = dma.done %s183, 32
        $region32: #{tpu_custom_call.1} parent=27 // pred_fallthru
          _
        %s191 = sand.u32 %s50, 1
        %s192 = scalar_lea.sflag [#allocation3], %s191
        %s193 = sand.u32 %s50, 1
        %s194 = smul.addr %s193, 2
        %s195 = scalar_lea.vmem [#allocation2], %s194
        %p196 = pneg %p63
        %p197 = pneg %p60
        %s198 = smul.u32 2, %s25
        %p199 = scmp.lt.s32.totalorder %s24, 0
        %s200 = scalar_select %p199, %s24, 0
        %p201 = scmp.lt.s32.totalorder %s198, 1
        %s202 = scalar_select %p201, %s198, 1
        %s203 = smul.addr %s200, 2
        %s204 = sadd.s32 %s202, %s203
        %s205 = scalar_lea.vmem %s1, %s204
        %p206 = pneg %p91
        %p207 = pneg %p88
        %p208 = pneg %p121
        %p209 = pneg %p118
        %s210 = sand.u32 %s108, 1
        %s211 = scalar_lea.sflag [#allocation4], %s210
        %s212 = sand.u32 %s108, 1
        %s213 = smul.addr %s212, 2
        %s214 = scalar_lea.vmem [#allocation5], %s213
        %s215 = smul.u32 2, %s25
        %s216 = smul.u32 2, %s25
        %p217 = scmp.lt.s32.totalorder %s24, 0
        %s218 = scalar_select %p217, %s24, 0
        %p219 = scmp.lt.s32.totalorder %s216, 1
        %s220 = scalar_select %p219, %s216, 1
        %s221 = smul.addr %s218, 2
        %s222 = sadd.s32 %s220, %s221
        %s223 = scalar_lea.vmem %s1, %s222
        %s224 = smul.u32 2, %s25
        %s225 = smul.u32 2, %s25
        %v226 = vld [vmem:[%s186] sm:$0x3]
        %v227 = vld [vmem:[%s223] sm:$0x3]
        %v228 = vadd.f32 %v226, %v227
        %v229 = vlaneseq
        %vm230 = vcmp.ge.s32.totalorder %v229, 0
        %vm231 = vcmp.lt.s32.totalorder %v229, 256
        %vm232 = vmand %vm230, %vm231
        %233 = vst.msk [vmem:[%s214] sm:$0x3] %vm232, %v228
        %s234 = sand.u32 %s108, 1
        %s235 = scalar_lea.sflag [#allocation4], %s234
        %s236 = sand.u32 %s108, 1
        %s237 = smul.addr %s236, 2
        %s238 = scalar_lea.vmem [#allocation5], %s237
        // Predicated region
        $region33: #{tpu_custom_call.1} parent=27 // pred_check
          %p239 = pneg %p118
        $region34: #{tpu_custom_call.1} parent=27 // pred_check_branch
          %241 = sbr.rel (%p239) target = $region36
        $region35: #{tpu_custom_call.1} parent=27 // pred_region
          %s242 = smul.u32 2, %s25
          %s244 = ssub.s32 32, 32
          %245 = vsyncadd %s235, %s244
          %s246 = smul.addr %s24, 2
          %s247 = sadd.s32 %s242, %s246
          %s248 = smul.addr %s26, 2
          %s249 = sadd.s32 %s247, %s248
          %s250 = smul.addr %s249, 16
          %s251 = scalar_lea.hbm %s2, %s250
          %s253 = sshll.u32 %s238, 4
          %s254 = int_to_ptr.vmem [resolvable:$true] %s253
          %256 = dma.vmem_to_hbm [thread:$0]  %s254, 32, %s251, %s235
        $region36: #{tpu_custom_call.1} parent=27 // pred_fallthru
          _
      $region28: #{tpu_custom_call.1} parent=5 // pred_fallthru
        _
      %p257 = scmp.le.s32.totalorder 2, %s14
      // Predicated region
      $region37: #{tpu_custom_call.1} parent=5 // pred_check
        %p258 = pneg %p257
      $region38: #{tpu_custom_call.1} parent=5 // pred_check_branch
        %260 = sbr.rel (%p258) target = $region40
      $region39: #{tpu_custom_call.1} parent=5 // pred_region
        %s261 = ssub.s32 %s14, 2
        // Predicated region
        $region41: #{tpu_custom_call.1} parent=39 // pred_check
          %p262 = pneg %p124
        $region42: #{tpu_custom_call.1} parent=39 // pred_check_branch
          %264 = sbr.rel (%p262) target = $region44
        $region43: #{tpu_custom_call.1} parent=39 // pred_region
          %s265 = sand.u32 %s109, 1
          %s266 = scalar_lea.sflag [#allocation4], %s265
          %s267 = sand.u32 %s109, 1
          %s268 = smul.addr %s267, 2
          %s269 = scalar_lea.vmem [#allocation5], %s268
          %270 = dma.done %s266, 32
        $region44: #{tpu_custom_call.1} parent=39 // pred_fallthru
          _
      $region40: #{tpu_custom_call.1} parent=5 // pred_fallthru
        _
    $region6: #{tpu_custom_call.1} parent=1 // loop_footer
      %s18 = sadd.s32 1, %s14
    $region7: #{tpu_custom_call.1} parent=1 // loop_footer_branch
      %13 = sbr.rel target = $region3
    $region8: #{tpu_custom_call.1} parent=1 // loop_exit
      _
    %271 = vsyncpa [#allocation3], 1
    %s272 = scalar_lea.sflag [#allocation3], 1
    %273 = vsyncpa %s272, 1
    %274 = vsyncpa [#allocation4], 1
    %s275 = scalar_lea.sflag [#allocation4], 1
    %276 = vsyncpa %s275, 1

</llo_original>
